<compile_context>
chip_gen: v7x
topology: tpu7x:2x2x1
jax: 0.10.0
libtpu: 0.0.40
codegen_flags: <defaults>
</compile_context>

<pallas_src>
import functools

import jax
import jax.numpy as jnp
from jax import lax
from jax.experimental import pallas as pl
from jax.experimental.pallas import tpu as pltpu

EPS = 1e-6
LANE = 128
SUBLANE = 8
VMEM_BUDGET_BYTES = 44 << 20  # leave headroom on v7x's 64 MiB VMEM


def _round_up(x, m):
    return ((x + m - 1) // m) * m


def _pick_hw_chunk(hw, max_chunk=32):
    # Largest multiple-of-8 divisor of HW that is <= max_chunk (keeps every
    # pl.ds start 8-aligned on the sublane axis). Fall back to a single chunk.
    for c in range(min(hw, max_chunk), 0, -1):
        if hw % c == 0 and c % SUBLANE == 0:
            return c
    return hw


def _ubc_head_kernel(p_ref, x_ref, w_ref, b_ref, o_ref, acc_ref, *,
                     hw_chunk, num_chunks, hw_total):
    # p_ref:   (1, 1) f32 SMEM          -- learnable GeM exponent.
    # x_ref:   (TB, HW, C) VMEM         -- channels-last backbone features.
    # w_ref:   (C, NC_PAD) f32 VMEM     -- linear weight, transposed + lane-padded.
    # b_ref:   (1, NC_PAD) f32 VMEM     -- linear bias, lane-padded.
    # o_ref:   (TB, NC_PAD) f32 VMEM    -- logits tile (padded cols stay zero).
    # acc_ref: (TB, C) f32 VMEM scratch -- running sum of x**p over HW.
    p = p_ref[0, 0]
    inv_p = 1.0 / p

    acc_ref[...] = jnp.zeros_like(acc_ref)

    # Chunked accumulation over HW: keeps live f32 intermediates to one
    # (TB, hw_chunk, C) chunk + the (TB, C) accumulator, so the batch tile can
    # grow without blowing VMEM (the EUP exp/log is the binding slot).
    def body(c, carry):
        start = pl.multiple_of(c * hw_chunk, hw_chunk)
        xc = x_ref[:, pl.ds(start, hw_chunk), :].astype(jnp.float32)
        xc = jnp.maximum(xc, EPS)                  # clamp(min=eps)
        xp = jnp.exp(p * jnp.log(xc))              # x ** p (x > 0) on the EUP
        acc_ref[...] += jnp.sum(xp, axis=1)        # reduce over HW chunk
        return carry

    lax.fori_loop(0, num_chunks, body, 0, unroll=min(num_chunks, 8))

    pooled = acc_ref[...] * (1.0 / hw_total)       # mean over HW
    pooled = jnp.exp(inv_p * jnp.log(pooled))      # ** (1/p)

    # Matmul kept in f32: it is a negligible fraction of the EUP-bound GeM
    # work and keeps bit-level agreement with the f32 reference.
    logits = jnp.dot(pooled, w_ref[...], preferred_element_type=jnp.float32)
    o_ref[...] = logits + b_ref[...]


@functools.partial(jax.jit, static_argnames=("batch_tile",))
def ubc_head(features, p_scalar, weight, bias, *, batch_tile=32):
    """GeM(p) pooling + Linear head on channels-last backbone features.

    features: (B, H, W, C) or (B, HW, C), channels-last, f32 or bf16.
              Feed the backbone output channels-last -- this avoids an extra
              full HBM round trip of the feature map for a layout transpose.
    p_scalar: ()/(1,) learnable GeM exponent.
    weight:   (num_classes, C) linear weight.
    bias:     (num_classes,)   linear bias.
    Returns logits (B, num_classes) in float32.
    """
    if features.ndim == 4:
        b_, h_, w_, c_ = features.shape
        features = features.reshape(b_, h_ * w_, c_)   # free: merges trailing dims
    B, HW, C = features.shape
    NC = weight.shape[0]
    NC_PAD = _round_up(NC, LANE)            # lane-dense classifier width

    itemsize = features.dtype.itemsize
    hw_chunk = _pick_hw_chunk(HW)
    num_chunks = HW // hw_chunk

    # --- batch tile: as large as the VMEM budget allows (v7x has 64 MiB). ---
    per_row = (2 * HW * C * itemsize         # feature double buffer
               + 3 * hw_chunk * C * 4        # live f32 chunk intermediates
               + C * 4                       # accumulator row
               + 2 * NC_PAD * 4)             # output double buffer
    fixed = 2 * (C * NC_PAD * 4 + NC_PAD * 4) + (2 << 20)
    tb_cap = max(SUBLANE,
                 ((VMEM_BUDGET_BYTES - fixed) // per_row) // SUBLANE * SUBLANE)
    tile = max(SUBLANE, (min(batch_tile, tb_cap) // SUBLANE) * SUBLANE)

    if B <= SUBLANE:
        TB = B                                               # tiny batch: one step
    else:
        # Guarantee >=2 grid steps so both v7x TensorCores get work.
        TB = min(tile, _round_up(pl.cdiv(B, 2), SUBLANE))

    num_tiles = pl.cdiv(B, TB)
    B_pad = TB * num_tiles      # only the (tiny) logits output is rounded up;
                                # the feature map is never padded or copied.

    p_arr = jnp.asarray(p_scalar, jnp.float32).reshape(1, 1)
    w_pad = jnp.zeros((C, NC_PAD), jnp.float32).at[:, :NC].set(
        jnp.asarray(weight, jnp.float32).T)
    b_pad = jnp.zeros((1, NC_PAD), jnp.float32).at[:, :NC].set(
        jnp.asarray(bias, jnp.float32).reshape(1, NC))

    vmem_est = (2 * TB * HW * C * itemsize + fixed
                + TB * (3 * hw_chunk * C * 4 + C * 4 + 2 * NC_PAD * 4))
    vmem_limit = int(min(max(vmem_est + (4 << 20), 32 << 20), 64 << 20))

    kernel = functools.partial(_ubc_head_kernel, hw_chunk=hw_chunk,
                               num_chunks=num_chunks, hw_total=float(HW))

    cost = pl.CostEstimate(
        flops=2 * B_pad * HW * C + 2 * B_pad * C * NC_PAD,
        transcendentals=2 * B_pad * HW * C + 2 * B_pad * C,
        bytes_accessed=(B * HW * C * itemsize + C * NC_PAD * 4 + NC_PAD * 4
                        + B_pad * NC_PAD * 4),
    )

    out = pl.pallas_call(
        kernel,
        out_shape=jax.ShapeDtypeStruct((B_pad, NC_PAD), jnp.float32),
        grid=(num_tiles,),
        in_specs=[
            pl.BlockSpec(memory_space=pltpu.MemorySpace.SMEM),   # p (scalar)
            pl.BlockSpec((TB, HW, C), lambda i: (i, 0, 0)),      # features tile
            pl.BlockSpec((C, NC_PAD), lambda i: (0, 0)),         # weight (resident)
            pl.BlockSpec((1, NC_PAD), lambda i: (0, 0)),         # bias (resident)
        ],
        out_specs=pl.BlockSpec((TB, NC_PAD), lambda i: (i, 0)),
        scratch_shapes=[pltpu.VMEM((TB, C), jnp.float32)],
        compiler_params=pltpu.CompilerParams(
            dimension_semantics=("parallel",),
            vmem_limit_bytes=vmem_limit),
        cost_estimate=cost,
    )(p_arr, features, w_pad, b_pad)

    return out[:B, :NC]


def ubc_head_nchw(features_nchw, p_scalar, weight, bias, *, batch_tile=32):
    """Compatibility shim for NCHW backbones (PyTorch layout).

    Prefer emitting channels-last features from the backbone and calling
    `ubc_head` directly: this transpose costs a full extra HBM round trip of
    the feature map.
    """
    x = jnp.transpose(features_nchw, (0, 2, 3, 1))
    return ubc_head(x, p_scalar, weight, bias, batch_tile=batch_tile)


def ubc_head_ref(features_nhwc, p_scalar, weight, bias):
    """Pure-JAX reference mirroring the PyTorch GeM + Linear head (NHWC in)."""
    x = jnp.clip(features_nhwc.astype(jnp.float32), EPS, None)
    p = jnp.asarray(p_scalar, jnp.float32)
    pooled = jnp.mean(x ** p, axis=(1, 2)) ** (1.0 / p)        # (B, C)
    return pooled @ jnp.asarray(weight, jnp.float32).T + jnp.asarray(bias, jnp.float32)


if __name__ == "__main__":
    # Small, forward-consistent shapes: backbone feature map (B, Hf, Wf, in_features).
    B, C, H, W = 2, 32, 8, 8
    NUM_CLASSES = 5

    key = jax.random.PRNGKey(0)
    k_feat, k_w, k_b = jax.random.split(key, 3)

    # Channels-last synthetic "backbone output" (the fast path) + head params.
    features = jax.random.normal(k_feat, (B, H, W, C), jnp.float32)
    p_param = jnp.ones((1,), jnp.float32) * 3.0                 # GeM p (init = 3)
    lin_w = jax.random.normal(k_w, (NUM_CLASSES, C), jnp.float32) * 0.05
    lin_b = jax.random.normal(k_b, (NUM_CLASSES,), jnp.float32) * 0.01

    out = jax.block_until_ready(ubc_head(features, p_param[0], lin_w, lin_b))
    ref = ubc_head_ref(features, p_param[0], lin_w, lin_b)
    assert out.shape == (B, NUM_CLASSES), out.shape
    assert jnp.allclose(out, ref, atol=1e-4, rtol=1e-4), (out, ref)

    # Ragged batch (B=11 > 8): 2 grid steps, edge block read with NO feature pad.
    B2 = 11
    features2 = jax.random.normal(jax.random.PRNGKey(1), (B2, H, W, C), jnp.float32)
    out2 = jax.block_until_ready(ubc_head(features2, p_param[0], lin_w, lin_b))
    ref2 = ubc_head_ref(features2, p_param[0], lin_w, lin_b)
    assert out2.shape == (B2, NUM_CLASSES)
    assert jnp.allclose(out2, ref2, atol=1e-4, rtol=1e-4), (out2, ref2)

    # bf16 feature streaming (kernel upcasts to f32 internally).
    features3 = features2.astype(jnp.bfloat16)
    out3 = jax.block_until_ready(ubc_head(features3, p_param[0], lin_w, lin_b))
    ref3 = ubc_head_ref(features3, p_param[0], lin_w, lin_b)
    assert jnp.allclose(out3, ref3, atol=1e-3, rtol=1e-3), (out3, ref3)

    # NCHW compatibility shim (matches the PyTorch layout exactly).
    features_nchw = jnp.transpose(features, (0, 3, 1, 2))
    out4 = jax.block_until_ready(ubc_head_nchw(features_nchw, p_param[0], lin_w, lin_b))
    assert jnp.allclose(out4, ref, atol=1e-4, rtol=1e-4), (out4, ref)

    print("KERNEL_OK")
</pallas_src>

<mosaic_0001>
module attributes {stable_mosaic.version = 11 : i64} {
  func.func @_ubc_head_kernel(%arg0: i32, %arg1: memref<1x1xf32, #tpu.memory_space<smem>>, %arg2: memref<2x64x32xf32, #tpu.memory_space<vmem>>, %arg3: memref<32x128xf32, #tpu.memory_space<vmem>>, %arg4: memref<1x128xf32, #tpu.memory_space<vmem>>, %arg5: memref<2x128xf32, #tpu.memory_space<vmem>>, %arg6: memref<2x32xf32, #tpu.memory_space<vmem>>) attributes {dimension_semantics = [#tpu.dimension_semantics<parallel>], iteration_bounds = array<i64: 1>, scalar_prefetch = 0 : i64, scratch_operands = 1 : i64, tpu.core_type = #tpu.core_type<tc>, window_params = [{transform_indices = @transform_0, window_bounds = array<i64: 1, 1>}, {transform_indices = @transform_1, window_bounds = array<i64: 2, 64, 32>}, {pipeline_mode = #tpu.pipeline_mode<synchronous>, transform_indices = @transform_2, window_bounds = array<i64: 32, 128>}, {pipeline_mode = #tpu.pipeline_mode<synchronous>, transform_indices = @transform_3, window_bounds = array<i64: 1, 128>}, {transform_indices = @transform_4, window_bounds = array<i64: 2, 128>}]} {
    %c0 = arith.constant 0 : index
    %c0_0 = arith.constant 0 : index
    %0 = memref.load %arg1[%c0, %c0_0] : memref<1x1xf32, #tpu.memory_space<smem>>
    %cst = arith.constant 1.000000e+00 : f32
    %1 = arith.divf %cst, %0 : f32
    %cst_1 = arith.constant 0.000000e+00 : f32
    %2 = vector.broadcast %cst_1 : f32 to vector<2x32xf32>
    %c0_2 = arith.constant 0 : index
    %c0_3 = arith.constant 0 : index
    %3 = vector.load %arg6[%c0_2, %c0_3] : memref<2x32xf32, #tpu.memory_space<vmem>>, vector<2x32xf32>
    tpu.vector_store %arg6[%c0_2, %c0_3], %2 {strides = array<i32>} : memref<2x32xf32, #tpu.memory_space<vmem>>, vector<2x32xf32>,
    %c0_i32 = arith.constant 0 : i32
    %c32_i32 = arith.constant 32 : i32
    %4 = arith.muli %c0_i32, %c32_i32 : i32
    %5 = tpu.assume_multiple %4, 32 : i32
    %c0_4 = arith.constant 0 : index
    %6 = arith.index_cast %5 : i32 to index
    %c0_5 = arith.constant 0 : index
    %7 = vector.load %arg2[%c0_4, %6, %c0_5] : memref<2x64x32xf32, #tpu.memory_space<vmem>>, vector<2x32x32xf32>
    %cst_6 = arith.constant 9.99999997E-7 : f32
    %8 = vector.broadcast %cst_6 : f32 to vector<2x32x32xf32>
    %9 = arith.maximumf %7, %8 : vector<2x32x32xf32>
    %10 = math.log %9 : vector<2x32x32xf32>
    %11 = vector.broadcast %0 : f32 to vector<2x32x32xf32>
    %12 = arith.mulf %11, %10 : vector<2x32x32xf32>
    %13 = math.exp %12 : vector<2x32x32xf32>
    %c0_7 = arith.constant 0 : index
    %c0_8 = arith.constant 0 : index
    %14 = vector.load %arg6[%c0_7, %c0_8] : memref<2x32xf32, #tpu.memory_space<vmem>>, vector<2x32xf32>
    %cst_9 = arith.constant dense<0.000000e+00> : vector<2x32xf32>
    %15 = vector.multi_reduction <add>, %13, %cst_9 [1] : vector<2x32x32xf32> to vector<2x32xf32>
    %16 = arith.addf %14, %15 : vector<2x32xf32>
    %c0_10 = arith.constant 0 : index
    %c0_11 = arith.constant 0 : index
    %17 = vector.load %arg6[%c0_10, %c0_11] : memref<2x32xf32, #tpu.memory_space<vmem>>, vector<2x32xf32>
    tpu.vector_store %arg6[%c0_10, %c0_11], %16 {strides = array<i32>} : memref<2x32xf32, #tpu.memory_space<vmem>>, vector<2x32xf32>,
    %c1_i32 = arith.constant 1 : i32
    %c32_i32_12 = arith.constant 32 : i32
    %18 = arith.muli %c1_i32, %c32_i32_12 : i32
    %19 = tpu.assume_multiple %18, 32 : i32
    %c0_13 = arith.constant 0 : index
    %20 = arith.index_cast %19 : i32 to index
    %c0_14 = arith.constant 0 : index
    %21 = vector.load %arg2[%c0_13, %20, %c0_14] : memref<2x64x32xf32, #tpu.memory_space<vmem>>, vector<2x32x32xf32>
    %cst_15 = arith.constant 9.99999997E-7 : f32
    %22 = vector.broadcast %cst_15 : f32 to vector<2x32x32xf32>
    %23 = arith.maximumf %21, %22 : vector<2x32x32xf32>
    %24 = math.log %23 : vector<2x32x32xf32>
    %25 = vector.broadcast %0 : f32 to vector<2x32x32xf32>
    %26 = arith.mulf %25, %24 : vector<2x32x32xf32>
    %27 = math.exp %26 : vector<2x32x32xf32>
    %c0_16 = arith.constant 0 : index
    %c0_17 = arith.constant 0 : index
    %28 = vector.load %arg6[%c0_16, %c0_17] : memref<2x32xf32, #tpu.memory_space<vmem>>, vector<2x32xf32>
    %cst_18 = arith.constant dense<0.000000e+00> : vector<2x32xf32>
    %29 = vector.multi_reduction <add>, %27, %cst_18 [1] : vector<2x32x32xf32> to vector<2x32xf32>
    %30 = arith.addf %28, %29 : vector<2x32xf32>
    %c0_19 = arith.constant 0 : index
    %c0_20 = arith.constant 0 : index
    %31 = vector.load %arg6[%c0_19, %c0_20] : memref<2x32xf32, #tpu.memory_space<vmem>>, vector<2x32xf32>
    tpu.vector_store %arg6[%c0_19, %c0_20], %30 {strides = array<i32>} : memref<2x32xf32, #tpu.memory_space<vmem>>, vector<2x32xf32>,
    %c2_i32 = arith.constant 2 : i32
    %c0_21 = arith.constant 0 : index
    %c0_22 = arith.constant 0 : index
    %32 = vector.load %arg6[%c0_21, %c0_22] : memref<2x32xf32, #tpu.memory_space<vmem>>, vector<2x32xf32>
    %cst_23 = arith.constant 1.562500e-02 : f32
    %33 = vector.broadcast %cst_23 : f32 to vector<2x32xf32>
    %34 = arith.mulf %32, %33 : vector<2x32xf32>
    %35 = math.log %34 : vector<2x32xf32>
    %36 = vector.broadcast %1 : f32 to vector<2x32xf32>
    %37 = arith.mulf %36, %35 : vector<2x32xf32>
    %38 = math.exp %37 : vector<2x32xf32>
    %c0_24 = arith.constant 0 : index
    %c0_25 = arith.constant 0 : index
    %39 = vector.load %arg3[%c0_24, %c0_25] : memref<32x128xf32, #tpu.memory_space<vmem>>, vector<32x128xf32>
    %cst_26 = arith.constant dense<0.000000e+00> : vector<2x128xf32>
    %40 = tpu.matmul %38, %39, %cst_26 {dimension_numbers = #tpu.dot_dimension_numbers<[1], [0], [0], [1], [0, 0, 1, 1], [], []>} : vector<2x32xf32>, vector<32x128xf32>, vector<2x128xf32> -> vector<2x128xf32>
    %c0_27 = arith.constant 0 : index
    %c0_28 = arith.constant 0 : index
    %41 = vector.load %arg4[%c0_27, %c0_28] : memref<1x128xf32, #tpu.memory_space<vmem>>, vector<1x128xf32>
    %42 = vector.broadcast %41 : vector<1x128xf32> to vector<2x128xf32>
    %43 = arith.addf %40, %42 : vector<2x128xf32>
    %c0_29 = arith.constant 0 : index
    %c0_30 = arith.constant 0 : index
    %44 = vector.load %arg5[%c0_29, %c0_30] : memref<2x128xf32, #tpu.memory_space<vmem>>, vector<2x128xf32>
    tpu.vector_store %arg5[%c0_29, %c0_30], %43 {strides = array<i32>} : memref<2x128xf32, #tpu.memory_space<vmem>>, vector<2x128xf32>,
    return
  }
  func.func @transform_0(%arg0: i32) -> (i32, i32) {
    %c0_i32 = arith.constant 0 : i32
    %c0_i32_0 = arith.constant 0 : i32
    %c0_i32_1 = arith.constant 0 : i32
    return %c0_i32, %c0_i32_0 : i32, i32
  }
  func.func @transform_1(%arg0: i32) -> (i32, i32, i32) {
    %c0_i32 = arith.constant 0 : i32
    %c0_i32_0 = arith.constant 0 : i32
    %c0_i32_1 = arith.constant 0 : i32
    return %arg0, %c0_i32, %c0_i32_0 : i32, i32, i32
  }
  func.func @transform_2(%arg0: i32) -> (i32, i32) {
    %c0_i32 = arith.constant 0 : i32
    %c0_i32_0 = arith.constant 0 : i32
    %c0_i32_1 = arith.constant 0 : i32
    return %c0_i32, %c0_i32_0 : i32, i32
  }
  func.func @transform_3(%arg0: i32) -> (i32, i32) {
    %c0_i32 = arith.constant 0 : i32
    %c0_i32_0 = arith.constant 0 : i32
    %c0_i32_1 = arith.constant 0 : i32
    return %c0_i32, %c0_i32_0 : i32, i32
  }
  func.func @transform_4(%arg0: i32) -> (i32, i32) {
    %c0_i32 = arith.constant 0 : i32
    %c0_i32_0 = arith.constant 0 : i32
    return %arg0, %c0_i32 : i32, i32
  }
}

</mosaic_0001>

<llo_original>
// kernel: ubc_head.1
$region0: #{ubc_head.1}
  #allocation0 [shape = 'u32[]', space=smem, size = 0x4, offset = 0x4, fixed_abs, tag = 'smem constant byte address 0x4 - core index']
  #allocation1 [shape = 'u32[144,128]{1,0:T(1,128)}', space=vmem, size = 0x12000, scoped, tag = 'internal scratch']
  #allocation2 [shape = 'f32[2,32]{1,0:T(2,128)}', space=vmem, size = 0x400, scoped, tag = 'scratch operand']
  #allocation3 [shape = 'f32[1,1]{1,0:T(1,128)S(6)}', space=smem, size = 0x200, scoped, tag = 'scoped memory for ubc_head.1']
  %s0 = inlined_call_operand.<no memory space> [shape: f32[1,1], index: 0, kind: input, shape index: {}]
  %s1 = inlined_call_operand.vmem [shape: f32[2,64,32], index: 1, kind: input, shape index: {}]
  %s2 = inlined_call_operand.vmem [shape: f32[32,128], index: 2, kind: input, shape index: {}]
  %s3 = inlined_call_operand.vmem [shape: f32[1,128], index: 3, kind: input, shape index: {}]
  %s4 = inlined_call_operand.hbm [shape: f32[2,128], index: 4, kind: output, shape index: {}]
  %s5 = sld [smem:[#allocation0]]
  $region26: #{ubc_head.1} parent=0
    _
  %s7 = ssub.s32 1, %s5
  %s8 = scalar_select 0, %s7, %s5
  %9 = sst [smem:[#allocation3]] %s0
  $region1: #{ubc_head.1} parent=0
    #allocation4 [shape = 'u8[1024]{0}', space=vmem, size = 0x400, scoped, tag = 'output window, operand 0, single buffered']
    #allocation5 [shape = 's32[1]{0}', space=sflag, size = 0x4, scoped, tag = 'scoped memory for ubc_head.1']
    %10 = vsyncpa [#allocation5], 0
    // Predicated region
    $region2: #{ubc_head.1} parent=1 // pred_check
      _
    $region3: #{ubc_head.1} parent=1 // pred_check_branch
      %12 = sbr.rel (0) target = $region5
    $region4: #{ubc_head.1} parent=1 // pred_region
      _
    $region5: #{ubc_head.1} parent=1 // pred_fallthru
      _
    // Predicated region
    $region6: #{ubc_head.1} parent=1 // pred_check
      _
    $region7: #{ubc_head.1} parent=1 // pred_check_branch
      %14 = sbr.rel (0) target = $region9
    $region8: #{ubc_head.1} parent=1 // pred_region
      _
    $region9: #{ubc_head.1} parent=1 // pred_fallthru
      _
    // Predicated region
    $region10: #{ubc_head.1} parent=1 // pred_check
      _
    $region11: #{ubc_head.1} parent=1 // pred_check_branch
      %16 = sbr.rel (0) target = $region13
    $region12: #{ubc_head.1} parent=1 // pred_region
      _
    $region13: #{ubc_head.1} parent=1 // pred_fallthru
      _
    // Predicated region
    $region14: #{ubc_head.1} parent=1 // pred_check
      _
    $region15: #{ubc_head.1} parent=1 // pred_check_branch
      %18 = sbr.rel (0) target = $region17
    $region16: #{ubc_head.1} parent=1 // pred_region
      _
    $region17: #{ubc_head.1} parent=1 // pred_fallthru
      _
    %s19 = sld [smem:[#allocation3]]
    %v20 = vstv %s19
    %v21 = vrcp.pop %v20
    %s22 = vtos %v21
    %vm23 = vcmask 254976
    %24 = vst.msk [vmem:[#allocation2] sm:$0x3] %vm23, 0.0
    %v25 = vld [vmem:[%s1] sm:$0xff]
    %v26 = vld [vmem:[%s1 + $0x8] sm:$0xff]
    %v27 = vld [vmem:[%s1 + $0x10] sm:$0xff]
    %v28 = vld [vmem:[%s1 + $0x18] sm:$0xff]
    %v29 = vld [vmem:[%s1 + $0x40] sm:$0xff]
    %v30 = vld [vmem:[%s1 + $0x48] sm:$0xff]
    %v31 = vld [vmem:[%s1 + $0x50] sm:$0xff]
    %v32 = vld [vmem:[%s1 + $0x58] sm:$0xff]
    %v33 = vmax.f32 %v25, 1e-06
    %v34 = vmax.f32 %v26, 1e-06
    %v35 = vmax.f32 %v27, 1e-06
    %v36 = vmax.f32 %v28, 1e-06
    %v37 = vmax.f32 %v29, 1e-06
    %v38 = vmax.f32 %v30, 1e-06
    %v39 = vmax.f32 %v31, 1e-06
    %v40 = vmax.f32 %v32, 1e-06
    %v41 = vlog2.pop %v33
    %v42 = vmul.f32 %v41, 0.6931472
    %v43 = vlog2.pop %v34
    %v44 = vmul.f32 %v43, 0.6931472
    %v45 = vlog2.pop %v35
    %v46 = vmul.f32 %v45, 0.6931472
    %v47 = vlog2.pop %v36
    %v48 = vmul.f32 %v47, 0.6931472
    %v49 = vlog2.pop %v37
    %v50 = vmul.f32 %v49, 0.6931472
    %v51 = vlog2.pop %v38
    %v52 = vmul.f32 %v51, 0.6931472
    %v53 = vlog2.pop %v39
    %v54 = vmul.f32 %v53, 0.6931472
    %v55 = vlog2.pop %v40
    %v56 = vmul.f32 %v55, 0.6931472
    %v57 = vstv %s19
    %v58 = vmul.f32 %v57, %v42
    %v59 = vmul.f32 %v57, %v44
    %v60 = vmul.f32 %v57, %v46
    %v61 = vmul.f32 %v57, %v48
    %v62 = vmul.f32 %v57, %v50
    %v63 = vmul.f32 %v57, %v52
    %v64 = vmul.f32 %v57, %v54
    %v65 = vmul.f32 %v57, %v56
    %v66 = vmul.f32 %v58, 1.442695
    %v67 = vpow.pop %v66
    %v68 = vmul.f32 %v59, 1.442695
    %v69 = vpow.pop %v68
    %v70 = vmul.f32 %v60, 1.442695
    %v71 = vpow.pop %v70
    %v72 = vmul.f32 %v61, 1.442695
    %v73 = vpow.pop %v72
    %v74 = vmul.f32 %v62, 1.442695
    %v75 = vpow.pop %v74
    %v76 = vmul.f32 %v63, 1.442695
    %v77 = vpow.pop %v76
    %v78 = vmul.f32 %v64, 1.442695
    %v79 = vpow.pop %v78
    %v80 = vmul.f32 %v65, 1.442695
    %v81 = vpow.pop %v80
    %v82 = vld [vmem:[#allocation2] sm:$0x3]
    %vm83 = vcmask 261120
    %v84 = vsel %vm83, %v67, 0.0
    %v85 = vsel %vm83, %v69, 0.0
    %v86 = vadd.f32 %v84, %v85
    %v87 = vsel %vm83, %v71, 0.0
    %v88 = vadd.f32 %v86, %v87
    %v89 = vsel %vm83, %v73, 0.0
    %v90 = vadd.f32 %v88, %v89
    %v91 = vrot.slane %v90, 4
    %v92 = vadd.f32 %v90, %v91
    %v93 = vrot.slane %v92, 2
    %v94 = vadd.f32 %v92, %v93
    %v95 = vrot.slane %v94, 1
    %v96 = vadd.f32 %v94, %v95
    %v97 = vsel %vm83, %v75, 0.0
    %v98 = vsel %vm83, %v77, 0.0
    %v99 = vadd.f32 %v97, %v98
    %v100 = vsel %vm83, %v79, 0.0
    %v101 = vadd.f32 %v99, %v100
    %v102 = vsel %vm83, %v81, 0.0
    %v103 = vadd.f32 %v101, %v102
    %v104 = vrot.slane %v103, 4
    %v105 = vadd.f32 %v103, %v104
    %v106 = vrot.slane %v105, 2
    %v107 = vadd.f32 %v105, %v106
    %v108 = vrot.slane %v107, 1
    %v109 = vadd.f32 %v107, %v108
    %vm112 = vcmask 1041409
    %v113 = vsel %vm112, %v109, %v96
    %v115 = vadd.f32 %v82, %v113
    %116 = vst.msk [vmem:[#allocation2] sm:$0x3] %vm23, %v115
    %s117 = scalar_lea.vmem %s1, 32
    %v118 = vld [vmem:[%s117] sm:$0xff]
    %v119 = vld [vmem:[%s117 + $0x8] sm:$0xff]
    %v120 = vld [vmem:[%s117 + $0x10] sm:$0xff]
    %v121 = vld [vmem:[%s117 + $0x18] sm:$0xff]
    %v122 = vld [vmem:[%s117 + $0x40] sm:$0xff]
    %v123 = vld [vmem:[%s117 + $0x48] sm:$0xff]
    %v124 = vld [vmem:[%s117 + $0x50] sm:$0xff]
    %v125 = vld [vmem:[%s117 + $0x58] sm:$0xff]
    %v126 = vmax.f32 %v118, 1e-06
    %v127 = vmax.f32 %v119, 1e-06
    %v128 = vmax.f32 %v120, 1e-06
    %v129 = vmax.f32 %v121, 1e-06
    %v130 = vmax.f32 %v122, 1e-06
    %v131 = vmax.f32 %v123, 1e-06
    %v132 = vmax.f32 %v124, 1e-06
    %v133 = vmax.f32 %v125, 1e-06
    %v134 = vlog2.pop %v126
    %v135 = vmul.f32 %v134, 0.6931472
    %v136 = vlog2.pop %v127
    %v137 = vmul.f32 %v136, 0.6931472
    %v138 = vlog2.pop %v128
    %v139 = vmul.f32 %v138, 0.6931472
    %v140 = vlog2.pop %v129
    %v141 = vmul.f32 %v140, 0.6931472
    %v142 = vlog2.pop %v130
    %v143 = vmul.f32 %v142, 0.6931472
    %v144 = vlog2.pop %v131
    %v145 = vmul.f32 %v144, 0.6931472
    %v146 = vlog2.pop %v132
    %v147 = vmul.f32 %v146, 0.6931472
    %v148 = vlog2.pop %v133
    %v149 = vmul.f32 %v148, 0.6931472
    %v150 = vmul.f32 %v57, %v135
    %v151 = vmul.f32 %v57, %v137
    %v152 = vmul.f32 %v57, %v139
    %v153 = vmul.f32 %v57, %v141
    %v154 = vmul.f32 %v57, %v143
    %v155 = vmul.f32 %v57, %v145
    %v156 = vmul.f32 %v57, %v147
    %v157 = vmul.f32 %v57, %v149
    %v158 = vmul.f32 %v150, 1.442695
    %v159 = vpow.pop %v158
    %v160 = vmul.f32 %v151, 1.442695
    %v161 = vpow.pop %v160
    %v162 = vmul.f32 %v152, 1.442695
    %v163 = vpow.pop %v162
    %v164 = vmul.f32 %v153, 1.442695
    %v165 = vpow.pop %v164
    %v166 = vmul.f32 %v154, 1.442695
    %v167 = vpow.pop %v166
    %v168 = vmul.f32 %v155, 1.442695
    %v169 = vpow.pop %v168
    %v170 = vmul.f32 %v156, 1.442695
    %v171 = vpow.pop %v170
    %v172 = vmul.f32 %v157, 1.442695
    %v173 = vpow.pop %v172
    %v174 = vld [vmem:[#allocation2] sm:$0x3]
    %v175 = vsel %vm83, %v159, 0.0
    %v176 = vsel %vm83, %v161, 0.0
    %v177 = vadd.f32 %v175, %v176
    %v178 = vsel %vm83, %v163, 0.0
    %v179 = vadd.f32 %v177, %v178
    %v180 = vsel %vm83, %v165, 0.0
    %v181 = vadd.f32 %v179, %v180
    %v182 = vrot.slane %v181, 4
    %v183 = vadd.f32 %v181, %v182
    %v184 = vrot.slane %v183, 2
    %v185 = vadd.f32 %v183, %v184
    %v186 = vrot.slane %v185, 1
    %v187 = vadd.f32 %v185, %v186
    %v188 = vsel %vm83, %v167, 0.0
    %v189 = vsel %vm83, %v169, 0.0
    %v190 = vadd.f32 %v188, %v189
    %v191 = vsel %vm83, %v171, 0.0
    %v192 = vadd.f32 %v190, %v191
    %v193 = vsel %vm83, %v173, 0.0
    %v194 = vadd.f32 %v192, %v193
    %v195 = vrot.slane %v194, 4
    %v196 = vadd.f32 %v194, %v195
    %v197 = vrot.slane %v196, 2
    %v198 = vadd.f32 %v196, %v197
    %v199 = vrot.slane %v198, 1
    %v200 = vadd.f32 %v198, %v199
    %v203 = vsel %vm112, %v200, %v187
    %v205 = vadd.f32 %v174, %v203
    %206 = vst.msk [vmem:[#allocation2] sm:$0x3] %vm23, %v205
    %v207 = vld [vmem:[#allocation2] sm:$0x3]
    %v208 = vmul.f32 %v207, 0.015625
    %v209 = vlog2.pop %v208
    %v210 = vmul.f32 %v209, 0.6931472
    %v211 = vstv %s22
    %v212 = vmul.f32 %v211, %v210
    %v213 = vmul.f32 %v212, 1.442695
    %v214 = vpow.pop %v213
    %v215 = vld [vmem:[%s2] sm:$0xff]
    %v216 = vld [vmem:[%s2 + $0x8] sm:$0xff]
    %v217 = vld [vmem:[%s2 + $0x10] sm:$0xff]
    %v218 = vld [vmem:[%s2 + $0x18] sm:$0xff]
    %v219 = vld [vmem:[%s3] sm:$0x1]
    %v221 = vlaneseq
    %v222 = vshrl.u32 %v221, 7
    %v223 = vsub.s32 0, %v222
    %v224 = vrot.slane %v219, %v223
    %v227 = vsel %vm83, %v214, 0
    %229 = vmatprep.subr.mxu0 0.0
    %230 = vmatpush1.msra.mxu0 %v215
    %231 = vmatprep.subr.mxu0 0.0
    %232 = vmatpush1.msra.mxu0 %v216
    %233 = vmatprep.subr.mxu0 0.0
    %234 = vmatpush1.msra.mxu0 %v217
    %235 = vmatprep.subr.mxu0 0.0
    %236 = vmatpush1.msra.mxu0 %v218
    %237 = vmatprep.subr.mxu0 0.0
    %238 = vmatpush1.msra.mxu0 0.0
    %239 = vmatprep.subr.mxu0 0.0
    %240 = vmatpush1.msra.mxu0 0.0
    %241 = vmatprep.subr.mxu0 0.0
    %242 = vmatpush1.msra.mxu0 0.0
    %243 = vmatprep.subr.mxu0 0.0
    %244 = vmatpush1.msra.mxu0 0.0
    %245 = vmatprep.subr.mxu0 0.0
    %246 = vmatpush1.msra.mxu0 0.0
    %247 = vmatprep.subr.mxu0 0.0
    %248 = vmatpush1.msra.mxu0 0.0
    %249 = vmatprep.subr.mxu0 0.0
    %250 = vmatpush1.msra.mxu0 0.0
    %251 = vmatprep.subr.mxu0 0.0
    %252 = vmatpush1.msra.mxu0 0.0
    %253 = vmatprep.subr.mxu0 0.0
    %254 = vmatpush1.msra.mxu0 0.0
    %255 = vmatprep.subr.mxu0 0.0
    %256 = vmatpush1.msra.mxu0 0.0
    %257 = vmatprep.subr.mxu0 0.0
    %258 = vmatpush1.msra.mxu0 0.0
    %259 = vmatprep.subr.mxu0 0.0
    %260 = vmatpush1.msra.mxu0 0.0
    %261 = vmatprep.subr.mxu0 0.0
    %262 = vmatpush1.msra.mxu0 0.0
    %263 = vmatprep.subr.mxu0 0.0
    %264 = vmatpush1.msra.mxu0 0.0
    %265 = vmatprep.subr.mxu0 0.0
    %266 = vmatpush1.msra.mxu0 0.0
    %267 = vmatprep.subr.mxu0 0.0
    %268 = vmatpush1.msra.mxu0 0.0
    %269 = vmatprep.subr.mxu0 0.0
    %270 = vmatpush1.msra.mxu0 0.0
    %271 = vmatprep.subr.mxu0 0.0
    %272 = vmatpush1.msra.mxu0 0.0
    %273 = vmatprep.subr.mxu0 0.0
    %274 = vmatpush1.msra.mxu0 0.0
    %275 = vmatprep.subr.mxu0 0.0
    %276 = vmatpush1.msra.mxu0 0.0
    %277 = vmatprep.subr.mxu0 0.0
    %278 = vmatpush1.msra.mxu0 0.0
    %279 = vmatprep.subr.mxu0 0.0
    %280 = vmatpush1.msra.mxu0 0.0
    %281 = vmatprep.subr.mxu0 0.0
    %282 = vmatpush1.msra.mxu0 0.0
    %283 = vmatprep.subr.mxu0 0.0
    %284 = vmatpush1.msra.mxu0 0.0
    %285 = vmatprep.subr.mxu0 0.0
    %286 = vmatpush1.msra.mxu0 0.0
    %287 = vmatprep.subr.mxu0 0.0
    %288 = vmatpush1.msra.mxu0 0.0
    %289 = vmatprep.subr.mxu0 0.0
    %290 = vmatpush1.msra.mxu0 0.0
    %291 = vmatprep.subr.mxu0 0.0
    %292 = vmatpush1.msra.mxu0 0.0
    %293 = vmatprep.mubr.f32.mxu0 0.0
    %294 = vmatmul.mubr.f32.gmra.mrb[0].mxu0 %v227
    %v295 = vpop.f32.mrb[0].mxu0
    %v296 = vadd.f32 %v224, %v295
    %v297 = vpop.f32.mrb[0].mxu0
    %298 = vdwg.mxu0
    %299 = vst [vmem:[#allocation4] sm:$0x3] %v296
    // Predicated region
    $region18: #{ubc_head.1} parent=1 // pred_check
      _
    $region19: #{ubc_head.1} parent=1 // pred_check_branch
      %301 = sbr.rel (0) target = $region21
    $region20: #{ubc_head.1} parent=1 // pred_region
      %s303 = ssub.s32 32, 32
      %304 = vsyncadd [#allocation5], %s303
      %s306 = sshll.u32 [#allocation4], 4
      %s307 = int_to_ptr.vmem [resolvable:$true] %s306
      %309 = dma.vmem_to_hbm [thread:$0]  %s307, 32, %s4, [#allocation5]
    $region21: #{ubc_head.1} parent=1 // pred_fallthru
      _
    // Predicated region
    $region22: #{ubc_head.1} parent=1 // pred_check
      _
    $region23: #{ubc_head.1} parent=1 // pred_check_branch
      %311 = sbr.rel (0) target = $region25
    $region24: #{ubc_head.1} parent=1 // pred_region
      %312 = dma.done [#allocation5], 32
    $region25: #{ubc_head.1} parent=1 // pred_fallthru
      _
    %313 = vsyncpa [#allocation5], 1

</llo_original>
